<compile_context>
chip_gen: v5e
topology: v5e:2x2
jax: 0.10.0
libtpu: 0.0.40
codegen_flags: <defaults>
</compile_context>

<pallas_src>
import math
from functools import partial

import jax
import jax.numpy as jnp
import numpy as np
from jax.experimental import pallas as pl
from jax.experimental.pallas import tpu as pltpu


# ----------------------------------------------------------------------------
# Kernel 1: Q @ K^T on the MXU + ProbSparse measure M for a block of heads.
# No scores are written back to HBM.
# ----------------------------------------------------------------------------
def _measure_kernel(q_ref, k_ref, cnt_ref, m_ref, *, inv_sample_k):
    # q_ref:   (Bb, L_Q, D)   compute dtype
    # k_ref:   (Bb, L_K, D)   compute dtype
    # cnt_ref: (L_Q, L_K)     bf16, sample multiplicities (shared by all heads)
    # m_ref:   (1, Bb, L_Q)   f32, sparsity measure (lane-dense on L_Q)
    q = q_ref[...]
    k = k_ref[...]
    s = jax.lax.dot_general(
        q, k,
        dimension_numbers=(((2,), (2,)), ((0,), (0,))),
        preferred_element_type=jnp.float32,
    )                                                       # (Bb, L_Q, L_K) f32
    cnt = cnt_ref[...].astype(jnp.float32)                  # (L_Q, L_K)
    sampled = (cnt > 0.0)[None, :, :]
    # max over the sampled keys (duplicates irrelevant for max)
    mx = jnp.max(jnp.where(sampled, s, jnp.float32(-1e30)), axis=-1)
    # mean over the sample list, with multiplicity (matches torch.randint sampling)
    mean = jnp.sum(s * cnt[None, :, :], axis=-1) * inv_sample_k
    m_ref[0] = mx - mean


# ----------------------------------------------------------------------------
# Kernel 2: recompute exact scores of the top queries, softmax + attn@V,
# blocked cumsum initial context, and one-hot scatter — all per head block.
# ----------------------------------------------------------------------------
def _context_kernel(idx_ref, qt_ref, k_ref, v_ref, tri_ref, o_ref, *,
                    scale, chunk, n_chunks, cdtype, approx_recip):
    # idx_ref: (1, Bb, n_top) int32   top-query positions
    # qt_ref:  (Bb, n_top, D)         gathered top queries (compute dtype)
    # k_ref:   (Bb, L_K, D)           compute dtype
    # v_ref:   (Bb, L_V, D)           compute dtype
    # tri_ref: (T, T)                 lower-triangular ones (compute dtype), resident
    # o_ref:   (Bb, L_V, D)           output dtype
    qt = qt_ref[...]
    k = k_ref[...]
    v = v_ref[...]
    bb, l_v, d = v.shape
    n_top = qt.shape[1]

    # exact scores for the top queries, recomputed on the MXU (never in HBM)
    s = jax.lax.dot_general(
        qt, k, (((2,), (2,)), ((0,), (0,))),
        preferred_element_type=jnp.float32) * scale         # (Bb, n_top, L_K)

    # softmax over keys (f32 math)
    m = jnp.max(s, axis=-1, keepdims=True)
    p = jnp.exp(s - m)
    attn = p * pl.reciprocal(jnp.sum(p, axis=-1, keepdims=True), approx=approx_recip)

    # exact context of the top queries: batched (n_top, L_K) @ (L_K, D) on the MXU
    ctx_top = jax.lax.dot_general(
        attn.astype(cdtype), v, (((2,), (1,)), ((0,), (0,))),
        preferred_element_type=jnp.float32)                  # (Bb, n_top, D)
    ctx_top_c = ctx_top.astype(cdtype)

    idxs = idx_ref[0]                                        # (Bb, n_top) int32
    # small (Bb, T, T) broadcast (T <= 256), hoisted out of the chunk loop
    tri = jnp.broadcast_to(tri_ref[...][None, :, :], (bb, chunk, chunk))

    # blocked cumsum of V with a running prefix carry, fused with the scatter
    carry = jnp.zeros((bb, 1, d), jnp.float32)
    for c in range(n_chunks):
        vc = v[:, c * chunk:(c + 1) * chunk, :]              # (Bb, T, D)
        cum = jax.lax.dot_general(
            tri, vc, (((2,), (1,)), ((0,), (0,))),
            preferred_element_type=jnp.float32) + carry      # (Bb, T, D)
        carry = cum[:, chunk - 1:chunk, :]                   # prefix through this chunk

        # scatter exact contexts of the top queries falling in this chunk
        pos = c * chunk + jax.lax.broadcasted_iota(jnp.int32, (chunk, n_top), 0)
        eq = pos[None, :, :] == idxs[:, None, :]             # (Bb, T, n_top)
        hit = jnp.max(eq.astype(jnp.float32), axis=-1, keepdims=True) > 0.0
        scat = jax.lax.dot_general(
            eq.astype(cdtype), ctx_top_c, (((2,), (1,)), ((0,), (0,))),
            preferred_element_type=jnp.float32)              # (Bb, T, D)

        o_ref[:, c * chunk:(c + 1) * chunk, :] = jnp.where(hit, scat, cum).astype(o_ref.dtype)


# ----------------------------------------------------------------------------
# Wrapper helpers
# ----------------------------------------------------------------------------
def _vmem_capacity_bytes():
    try:
        return int(pltpu.get_tpu_info().vmem_capacity_bytes)
    except Exception:
        return 64 * 1024 * 1024      # conservative (v7x per-TC)


def _pick_chunk(l):
    for t in (256, 128, 64, 32, 16, 8):
        if l % t == 0:
            return t
    return l


def _pick_bh_block(bh, l_q, l_k, d, n_top, chunk, csize, budget_bytes):
    f32 = 4
    # kernel 1 per-head footprint: Q/K tiles (x2 buffers), scores + epilogue temps, M out
    k1 = (2 * (l_q + l_k) * d * csize
          + 3 * l_q * l_k * f32
          + 2 * l_q * f32)
    # kernel 2 per-head footprint: K/V/Qtop/idx tiles (x2), output (x2), tri broadcast,
    # scores/attn temps, chunk temporaries
    k2 = (2 * (2 * l_k * d * csize + n_top * d * csize + n_top * 4)
          + 2 * l_k * d * f32
          + chunk * chunk * csize
          + 3 * n_top * l_k * f32
          + 3 * chunk * d * f32)
    per_head = max(k1, k2)
    resident = 2 * (l_q * l_k * 2) + 2 * (chunk * chunk * csize)   # cnt (bf16) + tri
    cap = max(1, (budget_bytes - resident) // per_head)
    # keep the grid >= 2 (megacore sharding on v7x, pipelining everywhere)
    limit = min(cap, bh // 2) if bh >= 2 else 1
    best = 1
    for blk in range(1, bh + 1):
        if bh % blk == 0 and blk <= limit:
            best = blk
    return best


# ----------------------------------------------------------------------------
# Wrapper: glue (top-k, tiny Q gather, reshapes) in plain JAX; hot paths
# (QK^T, sparsity measure, softmax, attn@V, blocked cumsum, scatter) in Pallas.
# ----------------------------------------------------------------------------
def prob_attention(queries, keys, values, index_sample, *, factor=5, scale=None,
                   bh_block=None, compute_dtype=jnp.bfloat16):
    B, L_Q, H, D = queries.shape
    _, L_K, _, _ = keys.shape
    if L_Q != L_K:
        raise ValueError("mask_flag=True (cumsum + scatter) path requires L_Q == L_K == L_V")

    out_dtype = queries.dtype
    cdtype = jnp.dtype(compute_dtype)
    csize = cdtype.itemsize
    approx_recip = cdtype != jnp.dtype(jnp.float32)

    Q = jnp.transpose(queries, (0, 2, 1, 3)).reshape(B * H, L_Q, D).astype(cdtype)
    K = jnp.transpose(keys, (0, 2, 1, 3)).reshape(B * H, L_K, D).astype(cdtype)
    V = jnp.transpose(values, (0, 2, 1, 3)).reshape(B * H, L_K, D).astype(cdtype)
    BH = B * H

    sample_k = index_sample.shape[1]
    n_top = min(factor * int(np.ceil(np.log(L_Q))), L_Q)
    chunk = _pick_chunk(L_K)
    n_chunks = L_K // chunk

    vmem_cap = _vmem_capacity_bytes()
    vmem_limit = int(min(vmem_cap * 3 // 4, 100 * 1024 * 1024))
    budget = int(vmem_limit * 0.6)
    if bh_block is None:
        bh_block = _pick_bh_block(BH, L_Q, L_K, D, n_top, chunk, csize, budget)
    assert BH % bh_block == 0
    nblk = BH // bh_block
    grid = (nblk,)

    # Per-(query, key) sample multiplicities (shared across heads); exact in bf16.
    cnt = jnp.zeros((L_Q, L_K), jnp.float32).at[
        jnp.arange(L_Q)[:, None], index_sample].add(1.0).astype(jnp.bfloat16)

    cparams = pltpu.CompilerParams(dimension_semantics=("parallel",),
                                   vmem_limit_bytes=vmem_limit)

    # ---- kernel 1: ProbSparse measure M (no scores written to HBM) ----
    M3 = pl.pallas_call(
        partial(_measure_kernel, inv_sample_k=1.0 / float(sample_k)),
        out_shape=jax.ShapeDtypeStruct((nblk, bh_block, L_Q), jnp.float32),
        grid=grid,
        in_specs=[
            pl.BlockSpec((bh_block, L_Q, D), lambda g: (g, 0, 0)),
            pl.BlockSpec((bh_block, L_K, D), lambda g: (g, 0, 0)),
            pl.BlockSpec((L_Q, L_K), lambda g: (0, 0)),      # resident across the grid
        ],
        out_specs=pl.BlockSpec((1, bh_block, L_Q), lambda g: (g, 0, 0)),
        compiler_params=cparams,
    )(Q, K, cnt)
    M = M3.reshape(BH, L_Q)

    # TODO(synk): top-k selection stays in plain JAX (no clean Pallas top_k on TPU)
    _, idx = jax.lax.top_k(M, n_top)                         # (BH, n_top)
    idx = idx.astype(jnp.int32)
    # tiny gather of the top queries; kernel 2 recomputes their exact scores on the MXU
    q_top = jnp.take_along_axis(Q, idx[:, :, None], axis=1)  # (BH, n_top, D)
    idx3 = idx.reshape(nblk, bh_block, n_top)

    tri = jnp.tril(jnp.ones((chunk, chunk), jnp.float32)).astype(cdtype)
    scl = float(scale) if scale is not None else 1.0 / math.sqrt(D)

    # ---- kernel 2: scores recompute + softmax + attn@V + blocked cumsum + scatter ----
    ctx = pl.pallas_call(
        partial(_context_kernel, scale=scl, chunk=chunk, n_chunks=n_chunks,
                cdtype=cdtype, approx_recip=approx_recip),
        out_shape=jax.ShapeDtypeStruct((BH, L_K, D), out_dtype),
        grid=grid,
        in_specs=[
            pl.BlockSpec((1, bh_block, n_top), lambda g: (g, 0, 0)),
            pl.BlockSpec((bh_block, n_top, D), lambda g: (g, 0, 0)),
            pl.BlockSpec((bh_block, L_K, D), lambda g: (g, 0, 0)),
            pl.BlockSpec((bh_block, L_K, D), lambda g: (g, 0, 0)),
            pl.BlockSpec((chunk, chunk), lambda g: (0, 0)),   # resident across the grid
        ],
        out_specs=pl.BlockSpec((bh_block, L_K, D), lambda g: (g, 0, 0)),
        compiler_params=cparams,
    )(idx3, q_top, K, V, tri)

    context = jnp.transpose(ctx.reshape(B, H, L_K, D), (0, 2, 1, 3))   # (B, L_Q, H, D)
    return context, None                                     # output_attention=False


# ----------------------------------------------------------------------------
# Pure-JAX reference (mirrors the torch module with mask_flag=True)
# ----------------------------------------------------------------------------
def prob_attention_ref(queries, keys, values, index_sample, *, factor=5, scale=None):
    Q = jnp.transpose(queries, (0, 2, 1, 3)).astype(jnp.float32)
    K = jnp.transpose(keys, (0, 2, 1, 3)).astype(jnp.float32)
    V = jnp.transpose(values, (0, 2, 1, 3)).astype(jnp.float32)
    B, H, L_Q, D = Q.shape
    n_top = min(factor * int(np.ceil(np.log(L_Q))), L_Q)
    K_sample = K[:, :, index_sample, :]
    Q_K_sample = jnp.einsum('bhqd,bhqsd->bhqs', Q, K_sample)
    M = Q_K_sample.max(-1) - Q_K_sample.mean(-1)
    _, M_top = jax.lax.top_k(M, n_top)                       # (B, H, n_top)
    Q_reduce = jnp.take_along_axis(Q, M_top[..., None], axis=2)
    scl = scale if scale is not None else 1.0 / math.sqrt(D)
    scores_top = jnp.einsum('bhud,bhkd->bhuk', Q_reduce, K) * scl
    context = jnp.cumsum(V, axis=2)                          # mask_flag=True
    attn = jax.nn.softmax(scores_top, axis=-1)
    ctx_v = jnp.einsum('bhuk,bhkd->bhud', attn, V)
    b_idx = jnp.arange(B)[:, None, None]
    h_idx = jnp.arange(H)[None, :, None]
    context = context.at[b_idx, h_idx, M_top, :].set(ctx_v)
    return jnp.transpose(context, (0, 2, 1, 3))


if __name__ == "__main__":
    key = jax.random.PRNGKey(0)
    kq, kk, kv, ks = jax.random.split(key, 4)

    B, L, H, D = 2, 16, 4, 32      # L_Q == L_K == L (required by the cumsum/scatter path)
    factor = 2
    queries = jax.random.normal(kq, (B, L, H, D), dtype=jnp.float32)
    keys_ = jax.random.normal(kk, (B, L, H, D), dtype=jnp.float32)
    values = jax.random.normal(kv, (B, L, H, D), dtype=jnp.float32)

    sample_k = min(factor * int(np.ceil(np.log(L))), L)
    # deterministic equivalent of torch.randint(L_K, (L_Q, sample_k))
    index_sample = jax.random.randint(ks, (L, sample_k), 0, L)

    # f32 compute path: exact check against the pure-JAX reference
    out32, attn = prob_attention(queries, keys_, values, index_sample,
                                 factor=factor, scale=None,
                                 compute_dtype=jnp.float32)
    out32 = jax.block_until_ready(out32)
    ref = prob_attention_ref(queries, keys_, values, index_sample,
                             factor=factor, scale=None)
    np.testing.assert_allclose(np.asarray(out32), np.asarray(ref), rtol=1e-4, atol=1e-4)

    # default bf16 compute path (production): run + sanity-check (top-k may reorder
    # under bf16 rounding, so no exact comparison here)
    out_bf, _ = prob_attention(queries, keys_, values, index_sample,
                               factor=factor, scale=None)
    out_bf = jax.block_until_ready(out_bf)
    assert out_bf.shape == (B, L, H, D)
    assert np.isfinite(np.asarray(out_bf)).all()

    print("KERNEL_OK")
</pallas_src>

<mosaic_0001>
module attributes {stable_mosaic.version = 11 : i64} {
  func.func @_measure_kernel(%arg0: i32, %arg1: memref<4x16x32xf32, #tpu.memory_space<vmem>>, %arg2: memref<4x16x32xf32, #tpu.memory_space<vmem>>, %arg3: memref<16x16xbf16, #tpu.memory_space<vmem>>, %arg4: memref<1x4x16xf32, #tpu.memory_space<vmem>>) attributes {dimension_semantics = [#tpu.dimension_semantics<parallel>], iteration_bounds = array<i64: 2>, scalar_prefetch = 0 : i64, scratch_operands = 0 : i64, tpu.core_type = #tpu.core_type<tc>, window_params = [{transform_indices = @transform_0, window_bounds = array<i64: 4, 16, 32>}, {transform_indices = @transform_1, window_bounds = array<i64: 4, 16, 32>}, {pipeline_mode = #tpu.pipeline_mode<synchronous>, transform_indices = @transform_2, window_bounds = array<i64: 16, 16>}, {transform_indices = @transform_3, window_bounds = array<i64: 1, 4, 16>}]} {
    %c0 = arith.constant 0 : index
    %c0_0 = arith.constant 0 : index
    %c0_1 = arith.constant 0 : index
    %0 = vector.load %arg1[%c0, %c0_0, %c0_1] : memref<4x16x32xf32, #tpu.memory_space<vmem>>, vector<4x16x32xf32>
    %c0_2 = arith.constant 0 : index
    %c0_3 = arith.constant 0 : index
    %c0_4 = arith.constant 0 : index
    %1 = vector.load %arg2[%c0_2, %c0_3, %c0_4] : memref<4x16x32xf32, #tpu.memory_space<vmem>>, vector<4x16x32xf32>
    %cst = arith.constant dense<0.000000e+00> : vector<4x16x16xf32>
    %2 = tpu.matmul %0, %1, %cst {dimension_numbers = #tpu.dot_dimension_numbers<[2], [2], [1], [1], [0, 0, 0, 1, 1, 1], [0], [0]>} : vector<4x16x32xf32>, vector<4x16x32xf32>, vector<4x16x16xf32> -> vector<4x16x16xf32>
    %c0_5 = arith.constant 0 : index
    %c0_6 = arith.constant 0 : index
    %3 = vector.load %arg3[%c0_5, %c0_6] : memref<16x16xbf16, #tpu.memory_space<vmem>>, vector<16x16xbf16>
    %4 = arith.extf %3 : vector<16x16xbf16> to vector<16x16xf32>
    %cst_7 = arith.constant 0.000000e+00 : f32
    %5 = vector.broadcast %cst_7 : f32 to vector<16x16xf32>
    %6 = arith.cmpf ogt, %4, %5 : vector<16x16xf32>
    %7 = vector.shape_cast %6 : vector<16x16xi1> to vector<1x16x16xi1>
    %cst_8 = arith.constant -1.000000e+30 : f32
    %8 = vector.shape_cast %7 : vector<1x16x16xi1> to vector<1x16x16xi1>
    %9 = vector.broadcast %8 : vector<1x16x16xi1> to vector<4x16x16xi1>
    %10 = vector.broadcast %cst_8 : f32 to vector<4x16x16xf32>
    %11 = arith.select %9, %2, %10 : vector<4x16x16xi1>, vector<4x16x16xf32>
    %cst_9 = arith.constant dense<0xFF800000> : vector<4x16xf32>
    %12 = vector.multi_reduction <maximumf>, %11, %cst_9 [2] : vector<4x16x16xf32> to vector<4x16xf32>
    %13 = vector.shape_cast %4 : vector<16x16xf32> to vector<1x16x16xf32>
    %14 = vector.broadcast %13 : vector<1x16x16xf32> to vector<4x16x16xf32>
    %15 = arith.mulf %2, %14 : vector<4x16x16xf32>
    %cst_10 = arith.constant dense<0.000000e+00> : vector<4x16xf32>
    %16 = vector.multi_reduction <add>, %15, %cst_10 [2] : vector<4x16x16xf32> to vector<4x16xf32>
    %cst_11 = arith.constant 0.166666672 : f32
    %17 = vector.broadcast %cst_11 : f32 to vector<4x16xf32>
    %18 = arith.mulf %16, %17 : vector<4x16xf32>
    %19 = arith.subf %12, %18 : vector<4x16xf32>
    %c0_12 = arith.constant 0 : index
    %c0_13 = arith.constant 0 : index
    %c0_14 = arith.constant 0 : index
    %20 = vector.load %arg4[%c0_12, %c0_13, %c0_14] : memref<1x4x16xf32, #tpu.memory_space<vmem>>, vector<1x4x16xf32>
    %21 = vector.shape_cast %20 : vector<1x4x16xf32> to vector<4x16xf32>
    %22 = vector.shape_cast %19 : vector<4x16xf32> to vector<1x4x16xf32>
    tpu.vector_store %arg4[%c0_12, %c0_13, %c0_14], %22 {strides = array<i32>} : memref<1x4x16xf32, #tpu.memory_space<vmem>>, vector<1x4x16xf32>,
    return
  }
  func.func @transform_0(%arg0: i32) -> (i32, i32, i32) {
    %c0_i32 = arith.constant 0 : i32
    %c0_i32_0 = arith.constant 0 : i32
    %c0_i32_1 = arith.constant 0 : i32
    return %arg0, %c0_i32, %c0_i32_0 : i32, i32, i32
  }
  func.func @transform_1(%arg0: i32) -> (i32, i32, i32) {
    %c0_i32 = arith.constant 0 : i32
    %c0_i32_0 = arith.constant 0 : i32
    %c0_i32_1 = arith.constant 0 : i32
    return %arg0, %c0_i32, %c0_i32_0 : i32, i32, i32
  }
  func.func @transform_2(%arg0: i32) -> (i32, i32) {
    %c0_i32 = arith.constant 0 : i32
    %c0_i32_0 = arith.constant 0 : i32
    %c0_i32_1 = arith.constant 0 : i32
    return %c0_i32, %c0_i32_0 : i32, i32
  }
  func.func @transform_3(%arg0: i32) -> (i32, i32, i32) {
    %c0_i32 = arith.constant 0 : i32
    %c0_i32_0 = arith.constant 0 : i32
    %c0_i32_1 = arith.constant 0 : i32
    return %arg0, %c0_i32, %c0_i32_0 : i32, i32, i32
  }
}

</mosaic_0001>

<llo_original>
// kernel: tpu_custom_call.1
$region0: #{tpu_custom_call.1}
  #allocation0 [shape = 'u32[]', space=smem, size = 0x4, offset = 0x4, fixed_abs, tag = 'smem constant byte address 0x4 - core index']
  #allocation1 [shape = 'u32[72,128]{1,0:T(1,128)}', space=vmem, size = 0x9000, scoped, tag = 'internal scratch']
  %s0 = inlined_call_operand.hbm [shape: f32[8,16,32], index: 0, kind: input, shape index: {}]
  %s1 = inlined_call_operand.hbm [shape: f32[8,16,32], index: 1, kind: input, shape index: {}]
  %s2 = inlined_call_operand.hbm [shape: bf16[16,16], index: 2, kind: input, shape index: {}]
  %s3 = inlined_call_operand.hbm [shape: f32[2,4,16], index: 3, kind: output, shape index: {}]
  %s4 = sld [smem:[#allocation0]]
  $region57: #{tpu_custom_call.1} parent=0
    _
  %s6 = ssub.s32 1, %s4
  %s7 = scalar_select 0, %s6, %s4
  $region1: #{tpu_custom_call.1} parent=0
    #allocation2 [shape = 'u8[65536]{0}', space=vmem, size = 0x10000, scoped, tag = 'input window, operand 0']
    #allocation3 [shape = 's32[2]{0}', space=sflag, size = 0x8, scoped, tag = 'scoped memory for tpu_custom_call.1']
    #allocation4 [shape = 's32[2]{0}', space=sflag, size = 0x8, scoped, tag = 'scoped memory for tpu_custom_call.1']
    #allocation5 [shape = 'u8[65536]{0}', space=vmem, size = 0x10000, scoped, tag = 'input window, operand 1']
    #allocation6 [shape = 's32[2]{0}', space=sflag, size = 0x8, scoped, tag = 'scoped memory for tpu_custom_call.1']
    #allocation7 [shape = 'u8[4096]{0}', space=vmem, size = 0x1000, scoped, tag = 'input window, operand 2, single buffered']
    #allocation8 [shape = 'u8[4096]{0}', space=vmem, size = 0x1000, scoped, tag = 'output window, operand 0']
    %8 = vsyncpa [#allocation3], 0
    %s9 = scalar_lea.sflag [#allocation3], 1
    %10 = vsyncpa %s9, 0
    %11 = vsyncpa [#allocation6], 0
    %s12 = scalar_lea.sflag [#allocation6], 1
    %13 = vsyncpa %s12, 0
    %14 = vsyncpa [#allocation4], 0
    %s15 = scalar_lea.sflag [#allocation4], 1
    %16 = vsyncpa %s15, 0
    loop: start=0, step=1, limit=4
    $region2: #{tpu_custom_call.1} parent=1 // loop_pre_header
      _
    $region3: #{tpu_custom_call.1} parent=1 // loop_header
      %s18 = sphi 0, %s22
      %p19 = scmp.ge.s32.totalorder %s18, 4
      %s28 = sphi 0, %s30
      %s31 = sphi 0, %s28
      %s32 = sphi 0, %s31
      %s48 = sphi 0, %s32
      %s54 = sphi 0, %s56
      %s57 = sphi 0, %s54
      %s58 = sphi 0, %s57
      %s74 = sphi 0, %s58
      %s78 = sphi 0, %s78
      %s80 = sphi 0, %s78
      %s81 = sphi 0, %s80
      %s95 = sphi 0, %s81
      %s101 = sphi 0, %s103
      %s104 = sphi 0, %s101
      %s105 = sphi 0, %s104
      %s121 = sphi 0, %s105
    $region4: #{tpu_custom_call.1} parent=1 // loop_header_branch
      %21 = sbr.rel (%p19) target = $region8
    $region5: #{tpu_custom_call.1} parent=1 // loop_body
      %s23 = ssub.s32 %s18, 1
      %s24 = ssub.s32 %s18, 2
      %s25 = sadd.s32 %s18, 1
      %s26 = ssub.s32 %s18, %s25
      %p27 = scmp.eq.s32.totalorder %s26, 0
      %s29 = sadd.s32 %s28, 1
      %s30 = scalar_select %p27, %s28, %s29
      %p33 = pneg %p27
      %p34 = scmp.eq.s32.totalorder %s18, 1
      %p35 = por %p33, %p34
      %p36 = scmp.ne.s32.totalorder %s28, %s31
      %p37 = scmp.eq.s32.totalorder %s18, 0
      %p38 = por %p36, %p37
      %p39 = scmp.ne.s32.totalorder %s28, %s31
      %p40 = scmp.eq.s32.totalorder %s23, 1
      %p41 = por %p39, %p40
      %p42 = scmp.ne.s32.totalorder %s31, %s32
      %p43 = scmp.eq.s32.totalorder %s23, 0
      %p44 = por %p42, %p43
      %p45 = scmp.ne.s32.totalorder %s31, %s32
      %p46 = scmp.eq.s32.totalorder %s24, 1
      %p47 = por %p45, %p46
      %p49 = scmp.ne.s32.totalorder %s32, %s48
      %p50 = scmp.eq.s32.totalorder %s24, 0
      %p51 = por %p49, %p50
      %s52 = ssub.s32 %s18, %s25
      %p53 = scmp.eq.s32.totalorder %s52, 0
      %s55 = sadd.s32 %s54, 1
      %s56 = scalar_select %p53, %s54, %s55
      %p59 = pneg %p53
      %p60 = scmp.eq.s32.totalorder %s18, 1
      %p61 = por %p59, %p60
      %p62 = scmp.ne.s32.totalorder %s54, %s57
      %p63 = scmp.eq.s32.totalorder %s18, 0
      %p64 = por %p62, %p63
      %p65 = scmp.ne.s32.totalorder %s54, %s57
      %p66 = scmp.eq.s32.totalorder %s23, 1
      %p67 = por %p65, %p66
      %p68 = scmp.ne.s32.totalorder %s57, %s58
      %p69 = scmp.eq.s32.totalorder %s23, 0
      %p70 = por %p68, %p69
      %p71 = scmp.ne.s32.totalorder %s57, %s58
      %p72 = scmp.eq.s32.totalorder %s24, 1
      %p73 = por %p71, %p72
      %p75 = scmp.ne.s32.totalorder %s58, %s74
      %p76 = scmp.eq.s32.totalorder %s24, 0
      %p77 = por %p75, %p76
      %s79 = sadd.s32 %s78, 1
      %p82 = scmp.eq.s32.totalorder %s18, 1
      %p83 = scmp.ne.s32.totalorder %s78, %s80
      %p84 = scmp.eq.s32.totalorder %s18, 0
      %p85 = por %p83, %p84
      %p86 = scmp.ne.s32.totalorder %s78, %s80
      %p87 = scmp.eq.s32.totalorder %s23, 1
      %p88 = por %p86, %p87
      %p89 = scmp.ne.s32.totalorder %s80, %s81
      %p90 = scmp.eq.s32.totalorder %s23, 0
      %p91 = por %p89, %p90
      %p92 = scmp.ne.s32.totalorder %s80, %s81
      %p93 = scmp.eq.s32.totalorder %s24, 1
      %p94 = por %p92, %p93
      %p96 = scmp.ne.s32.totalorder %s81, %s95
      %p97 = scmp.eq.s32.totalorder %s24, 0
      %p98 = por %p96, %p97
      %s99 = ssub.s32 %s18, %s25
      %p100 = scmp.eq.s32.totalorder %s99, 0
      %s102 = sadd.s32 %s101, 1
      %s103 = scalar_select %p100, %s101, %s102
      %p106 = pneg %p100
      %p107 = scmp.eq.s32.totalorder %s18, 1
      %p108 = por %p106, %p107
      %p109 = scmp.ne.s32.totalorder %s101, %s104
      %p110 = scmp.eq.s32.totalorder %s18, 0
      %p111 = por %p109, %p110
      %p112 = scmp.ne.s32.totalorder %s101, %s104
      %p113 = scmp.eq.s32.totalorder %s23, 1
      %p114 = por %p112, %p113
      %p115 = scmp.ne.s32.totalorder %s104, %s105
      %p116 = scmp.eq.s32.totalorder %s23, 0
      %p117 = por %p115, %p116
      %p118 = scmp.ne.s32.totalorder %s104, %s105
      %p119 = scmp.eq.s32.totalorder %s24, 1
      %p120 = por %p118, %p119
      %p122 = scmp.ne.s32.totalorder %s105, %s121
      %p123 = scmp.eq.s32.totalorder %s24, 0
      %p124 = por %p122, %p123
      %p125 = scmp.le.s32.totalorder 1, %s18
      %p126 = scmp.lt.s32.totalorder %s18, 3
      %p127 = pnand %p125, %p126
      %p128 = pneg %p127
      // Predicated region
      $region9: #{tpu_custom_call.1} parent=5 // pred_check
        _
      $region10: #{tpu_custom_call.1} parent=5 // pred_check_branch
        %130 = sbr.rel (%p127) target = $region12
      $region11: #{tpu_custom_call.1} parent=5 // pred_region
        %s131 = ssub.s32 %s18, 1
        // Predicated region
        $region13: #{tpu_custom_call.1} parent=11 // pred_check
          %p132 = pneg %p91
        $region14: #{tpu_custom_call.1} parent=11 // pred_check_branch
          %134 = sbr.rel (%p132) target = $region16
        $region15: #{tpu_custom_call.1} parent=11 // pred_region
          %136 = vsyncadd [#allocation6], 0
          %s137 = sshll.u32 %s2, 4
          %s138 = int_to_ptr.hbm [resolvable:$true] %s137
          %s139 = sshll.u32 [#allocation7], 4
          %s140 = int_to_ptr.vmem [resolvable:$true] %s139
          %145 = dma.hbm_to_vmem [thread:$0]  %s138, 128, %s140, [#allocation6], 64, 64, 4
        $region16: #{tpu_custom_call.1} parent=11 // pred_fallthru
          _
      $region12: #{tpu_custom_call.1} parent=5 // pred_fallthru
        _
      %p146 = scmp.lt.s32.totalorder %s18, 2
      // Predicated region
      $region17: #{tpu_custom_call.1} parent=5 // pred_check
        %p147 = pneg %p146
      $region18: #{tpu_custom_call.1} parent=5 // pred_check_branch
        %149 = sbr.rel (%p147) target = $region20
      $region19: #{tpu_custom_call.1} parent=5 // pred_region
        // Predicated region
        $region21: #{tpu_custom_call.1} parent=19 // pred_check
          %p150 = pneg %p38
        $region22: #{tpu_custom_call.1} parent=19 // pred_check_branch
          %152 = sbr.rel (%p150) target = $region24
        $region23: #{tpu_custom_call.1} parent=19 // pred_region
          %s153 = sand.u32 %s28, 1
          %s154 = scalar_lea.sflag [#allocation3], %s153
          %s155 = sand.u32 %s28, 1
          %s156 = smul.addr %s155, 64
          %s157 = scalar_lea.vmem [#allocation2], %s156
          %s158 = smul.u32 4, %s18
          %160 = vsyncadd %s154, 0
          %s161 = smul.addr %s158, 2
          %s162 = smul.addr %s161, 8
          %s163 = scalar_lea.hbm %s0, %s162
          %s164 = sshll.u32 %s163, 4
          %s165 = int_to_ptr.hbm [resolvable:$true] %s164
          %s166 = sshll.u32 %s157, 4
          %s167 = int_to_ptr.vmem [resolvable:$true] %s166
          %172 = dma.hbm_to_vmem [thread:$0]  %s165, 1024, %s167, %s154, 128, 128, 8
        $region24: #{tpu_custom_call.1} parent=19 // pred_fallthru
          _
        // Predicated region
        $region25: #{tpu_custom_call.1} parent=19 // pred_check
          %p173 = pneg %p64
        $region26: #{tpu_custom_call.1} parent=19 // pred_check_branch
          %175 = sbr.rel (%p173) target = $region28
        $region27: #{tpu_custom_call.1} parent=19 // pred_region
          %s176 = sand.u32 %s18, 1
          %s177 = scalar_lea.sflag [#allocation6], %s176
          %s178 = sand.u32 %s54, 1
          %s179 = smul.addr %s178, 64
          %s180 = scalar_lea.vmem [#allocation5], %s179
          %s181 = smul.u32 4, %s18
          %183 = vsyncadd %s177, 0
          %s184 = smul.addr %s181, 2
          %s185 = smul.addr %s184, 8
          %s186 = scalar_lea.hbm %s1, %s185
          %s187 = sshll.u32 %s186, 4
          %s188 = int_to_ptr.hbm [resolvable:$true] %s187
          %s189 = sshll.u32 %s180, 4
          %s190 = int_to_ptr.vmem [resolvable:$true] %s189
          %195 = dma.hbm_to_vmem [thread:$0]  %s188, 1024, %s190, %s177, 128, 128, 8
        $region28: #{tpu_custom_call.1} parent=19 // pred_fallthru
          _
      $region20: #{tpu_custom_call.1} parent=5 // pred_fallthru
        _
      %p196 = scmp.le.s32.totalorder 1, %s18
      %p197 = scmp.lt.s32.totalorder %s18, 3
      %p198 = pnand %p196, %p197
      %p199 = pneg %p198
      // Predicated region
      $region29: #{tpu_custom_call.1} parent=5 // pred_check
        _
      $region30: #{tpu_custom_call.1} parent=5 // pred_check_branch
        %201 = sbr.rel (%p198) target = $region32
      $region31: #{tpu_custom_call.1} parent=5 // pred_region
        %s202 = ssub.s32 %s18, 1
        %s203 = sand.u32 %s31, 1
        %s204 = scalar_lea.sflag [#allocation3], %s203
        %s205 = sand.u32 %s31, 1
        %s206 = smul.addr %s205, 64
        %s207 = scalar_lea.vmem [#allocation2], %s206
        // Predicated region
        $region33: #{tpu_custom_call.1} parent=31 // pred_check
          %p208 = pneg %p44
        $region34: #{tpu_custom_call.1} parent=31 // pred_check_branch
          %210 = sbr.rel (%p208) target = $region36
        $region35: #{tpu_custom_call.1} parent=31 // pred_region
          %212 = dma.done %s204, 1024
        $region36: #{tpu_custom_call.1} parent=31 // pred_fallthru
          _
        %s213 = sand.u32 %s23, 1
        %s214 = scalar_lea.sflag [#allocation6], %s213
        %s215 = sand.u32 %s57, 1
        %s216 = smul.addr %s215, 64
        %s217 = scalar_lea.vmem [#allocation5], %s216
        // Predicated region
        $region37: #{tpu_custom_call.1} parent=31 // pred_check
          %p218 = pneg %p70
        $region38: #{tpu_custom_call.1} parent=31 // pred_check_branch
          %220 = sbr.rel (%p218) target = $region40
        $region39: #{tpu_custom_call.1} parent=31 // pred_region
          %222 = dma.done %s214, 1024
        $region40: #{tpu_custom_call.1} parent=31 // pred_fallthru
          _
        // Predicated region
        $region41: #{tpu_custom_call.1} parent=31 // pred_check
          %p223 = pneg %p91
        $region42: #{tpu_custom_call.1} parent=31 // pred_check_branch
          %225 = sbr.rel (%p223) target = $region44
        $region43: #{tpu_custom_call.1} parent=31 // pred_region
          %227 = dma.done [#allocation6], 128
        $region44: #{tpu_custom_call.1} parent=31 // pred_fallthru
          _
        %s228 = sand.u32 %s31, 1
        %s229 = scalar_lea.sflag [#allocation3], %s228
        %s230 = sand.u32 %s31, 1
        %s231 = smul.addr %s230, 64
        %s232 = scalar_lea.vmem [#allocation2], %s231
        %p233 = pneg %p44
        %p234 = pneg %p41
        %s235 = sand.u32 %s23, 1
        %s236 = scalar_lea.sflag [#allocation6], %s235
        %s237 = sand.u32 %s57, 1
        %s238 = smul.addr %s237, 64
        %s239 = scalar_lea.vmem [#allocation5], %s238
        %p240 = pneg %p70
        %p241 = pneg %p67
        %p242 = pneg %p91
        %p243 = pneg %p88
        %p244 = pneg %p117
        %p245 = pneg %p114
        %s246 = sand.u32 %s104, 1
        %s247 = scalar_lea.sflag [#allocation4], %s246
        %s248 = sand.u32 %s104, 1
        %s249 = smul.addr %s248, 4
        %s250 = scalar_lea.vmem [#allocation8], %s249
        %s251 = smul.u32 4, %s23
        %s252 = smul.u32 4, %s23
        %v253 = vld [vmem:[%s207] sm:$0xff]
        %v254 = vld [vmem:[%s207 + $0x8] sm:$0xff]
        %v255 = vld [vmem:[%s207 + $0x10] sm:$0xff]
        %v256 = vld [vmem:[%s207 + $0x18] sm:$0xff]
        %v257 = vld [vmem:[%s207 + $0x20] sm:$0xff]
        %v258 = vld [vmem:[%s207 + $0x28] sm:$0xff]
        %v259 = vld [vmem:[%s207 + $0x30] sm:$0xff]
        %v260 = vld [vmem:[%s207 + $0x38] sm:$0xff]
        %v261 = vld [vmem:[%s217] sm:$0xff]
        %v262 = vld [vmem:[%s217 + $0x8] sm:$0xff]
        %v263 = vld [vmem:[%s217 + $0x10] sm:$0xff]
        %v264 = vld [vmem:[%s217 + $0x18] sm:$0xff]
        %v265 = vld [vmem:[%s217 + $0x20] sm:$0xff]
        %v266 = vld [vmem:[%s217 + $0x28] sm:$0xff]
        %v267 = vld [vmem:[%s217 + $0x30] sm:$0xff]
        %v268 = vld [vmem:[%s217 + $0x38] sm:$0xff]
        %vm269 = vcmask 261120
        %v271 = vsel %vm269, %v253, 0
        %v274 = vsel %vm269, %v254, 0
        %v277 = vsel %vm269, %v261, 0
        %v280 = vsel %vm269, %v262, 0
        %282 = vmatpush.xpose.msra.mxu0 0.0
        %283 = vmatpush.xpose.msra.mxu0 0.0
        %284 = vmatpush.xpose.msra.mxu0 0.0
        %285 = vmatpush.xpose.msra.mxu0 0.0
        %286 = vmatpush.xpose.msra.mxu0 0.0
        %287 = vmatpush.xpose.msra.mxu0 0.0
        %288 = vmatpush.xpose.msra.mxu0 0.0
        %289 = vmatpush.xpose.msra.mxu0 0.0
        %290 = vmatpush.xpose.msra.mxu0 0.0
        %291 = vmatpush.xpose.msra.mxu0 0.0
        %292 = vmatpush.xpose.msra.mxu0 0.0
        %293 = vmatpush.xpose.msra.mxu0 0.0
        %294 = vmatpush.xpose.msra.mxu0 0.0
        %295 = vmatpush.xpose.msra.mxu0 0.0
        %296 = vmatpush.xpose.msra.mxu0 %v280
        %297 = vmatpush.xpose.msra.mxu0 %v277
        %298 = vmatmul.f32.gmra.mxu0 %v271
        %v299 = vpop.f32.mrf.mxu0
        %v300 = vadd.f32 0.0, %v299
        %301 = vmatmul.f32.gmra.mxu0 %v274
        %v302 = vpop.f32.mrf.mxu0
        %v303 = vadd.f32 0.0, %v302
        %304 = vdwg.mxu0
        %v306 = vsel %vm269, %v255, 0
        %v309 = vsel %vm269, %v256, 0
        %v312 = vsel %vm269, %v263, 0
        %v315 = vsel %vm269, %v264, 0
        %317 = vmatpush.xpose.msra.mxu0 0.0
        %318 = vmatpush.xpose.msra.mxu0 0.0
        %319 = vmatpush.xpose.msra.mxu0 0.0
        %320 = vmatpush.xpose.msra.mxu0 0.0
        %321 = vmatpush.xpose.msra.mxu0 0.0
        %322 = vmatpush.xpose.msra.mxu0 0.0
        %323 = vmatpush.xpose.msra.mxu0 0.0
        %324 = vmatpush.xpose.msra.mxu0 0.0
        %325 = vmatpush.xpose.msra.mxu0 0.0
        %326 = vmatpush.xpose.msra.mxu0 0.0
        %327 = vmatpush.xpose.msra.mxu0 0.0
        %328 = vmatpush.xpose.msra.mxu0 0.0
        %329 = vmatpush.xpose.msra.mxu0 0.0
        %330 = vmatpush.xpose.msra.mxu0 0.0
        %331 = vmatpush.xpose.msra.mxu0 %v315
        %332 = vmatpush.xpose.msra.mxu0 %v312
        %333 = vmatmul.f32.gmra.mxu0 %v306
        %v334 = vpop.f32.mrf.mxu0
        %v335 = vadd.f32 0.0, %v334
        %336 = vmatmul.f32.gmra.mxu0 %v309
        %v337 = vpop.f32.mrf.mxu0
        %v338 = vadd.f32 0.0, %v337
        %339 = vdwg.mxu0
        %v341 = vsel %vm269, %v257, 0
        %v344 = vsel %vm269, %v258, 0
        %v347 = vsel %vm269, %v265, 0
        %v350 = vsel %vm269, %v266, 0
        %352 = vmatpush.xpose.msra.mxu0 0.0
        %353 = vmatpush.xpose.msra.mxu0 0.0
        %354 = vmatpush.xpose.msra.mxu0 0.0
        %355 = vmatpush.xpose.msra.mxu0 0.0
        %356 = vmatpush.xpose.msra.mxu0 0.0
        %357 = vmatpush.xpose.msra.mxu0 0.0
        %358 = vmatpush.xpose.msra.mxu0 0.0
        %359 = vmatpush.xpose.msra.mxu0 0.0
        %360 = vmatpush.xpose.msra.mxu0 0.0
        %361 = vmatpush.xpose.msra.mxu0 0.0
        %362 = vmatpush.xpose.msra.mxu0 0.0
        %363 = vmatpush.xpose.msra.mxu0 0.0
        %364 = vmatpush.xpose.msra.mxu0 0.0
        %365 = vmatpush.xpose.msra.mxu0 0.0
        %366 = vmatpush.xpose.msra.mxu0 %v350
        %367 = vmatpush.xpose.msra.mxu0 %v347
        %368 = vmatmul.f32.gmra.mxu0 %v341
        %v369 = vpop.f32.mrf.mxu0
        %v370 = vadd.f32 0.0, %v369
        %371 = vmatmul.f32.gmra.mxu0 %v344
        %v372 = vpop.f32.mrf.mxu0
        %v373 = vadd.f32 0.0, %v372
        %374 = vdwg.mxu0
        %v376 = vsel %vm269, %v259, 0
        %v379 = vsel %vm269, %v260, 0
        %v382 = vsel %vm269, %v267, 0
        %v385 = vsel %vm269, %v268, 0
        %387 = vmatpush.xpose.msra.mxu0 0.0
        %388 = vmatpush.xpose.msra.mxu0 0.0
        %389 = vmatpush.xpose.msra.mxu0 0.0
        %390 = vmatpush.xpose.msra.mxu0 0.0
        %391 = vmatpush.xpose.msra.mxu0 0.0
        %392 = vmatpush.xpose.msra.mxu0 0.0
        %393 = vmatpush.xpose.msra.mxu0 0.0
        %394 = vmatpush.xpose.msra.mxu0 0.0
        %395 = vmatpush.xpose.msra.mxu0 0.0
        %396 = vmatpush.xpose.msra.mxu0 0.0
        %397 = vmatpush.xpose.msra.mxu0 0.0
        %398 = vmatpush.xpose.msra.mxu0 0.0
        %399 = vmatpush.xpose.msra.mxu0 0.0
        %400 = vmatpush.xpose.msra.mxu0 0.0
        %401 = vmatpush.xpose.msra.mxu0 %v385
        %402 = vmatpush.xpose.msra.mxu0 %v382
        %403 = vmatmul.f32.gmra.mxu0 %v376
        %v404 = vpop.f32.mrf.mxu0
        %v405 = vadd.f32 0.0, %v404
        %406 = vmatmul.f32.gmra.mxu0 %v379
        %v407 = vpop.f32.mrf.mxu0
        %v408 = vadd.f32 0.0, %v407
        %409 = vdwg.mxu0
        %v410 = vld [vmem:[#allocation7] sm:$0xf]
        %v411 = vld [vmem:[#allocation7 + $0x4] sm:$0xf]
        %v412 = vunpack.c.l.bf16 %v410
        %v413 = vunpack.c.l.bf16 %v411
        %vm414 = vcmp.gt.f32.partialorder %v412, 0.0
        %vm415 = vcmp.gt.f32.partialorder %v413, 0.0
        %v416 = vsel %vm414, 1, 0
        %v417 = vsel %vm415, 1, 0
        %vm418 = vcmp.eq.s32.totalorder %v416, 1
        %vm419 = vcmp.eq.s32.totalorder %v417, 1
        %v420 = vsel %vm418, %v300, -1e+30
        %v421 = vsel %vm419, %v303, -1e+30
        %v422 = vsel %vm418, %v335, -1e+30
        %v423 = vsel %vm419, %v338, -1e+30
        %v424 = vsel %vm418, %v370, -1e+30
        %v425 = vsel %vm419, %v373, -1e+30
        %v426 = vsel %vm418, %v405, -1e+30
        %v427 = vsel %vm419, %v408, -1e+30
        %vm428 = vcmask 130048
        %v429 = vsel %vm428, %v420, -inf
        %430 = vmax.xlane.f32.xlu0 %v429
        %v431 = vpop.xlane.xlu0 %430
        %v432 = vsel %vm428, %v421, -inf
        %433 = vmax.xlane.f32.xlu0 %v432
        %v434 = vpop.xlane.xlu0 %433
        %v435 = vsel %vm428, %v422, -inf
        %436 = vmax.xlane.f32.xlu0 %v435
        %v437 = vpop.xlane.xlu0 %436
        %v438 = vsel %vm428, %v423, -inf
        %439 = vmax.xlane.f32.xlu0 %v438
        %v440 = vpop.xlane.xlu0 %439
        %v441 = vsel %vm428, %v424, -inf
        %442 = vmax.xlane.f32.xlu0 %v441
        %v443 = vpop.xlane.xlu0 %442
        %v444 = vsel %vm428, %v425, -inf
        %445 = vmax.xlane.f32.xlu0 %v444
        %v446 = vpop.xlane.xlu0 %445
        %v447 = vsel %vm428, %v426, -inf
        %448 = vmax.xlane.f32.xlu0 %v447
        %v449 = vpop.xlane.xlu0 %448
        %v450 = vsel %vm428, %v427, -inf
        %451 = vmax.xlane.f32.xlu0 %v450
        %v452 = vpop.xlane.xlu0 %451
        %v453 = vmul.f32 %v300, %v412
        %v454 = vmul.f32 %v303, %v413
        %v455 = vmul.f32 %v335, %v412
        %v456 = vmul.f32 %v338, %v413
        %v457 = vmul.f32 %v370, %v412
        %v458 = vmul.f32 %v373, %v413
        %v459 = vmul.f32 %v405, %v412
        %v460 = vmul.f32 %v408, %v413
        %v461 = vsel %vm428, %v453, 0.0
        %462 = vadd.xlane.f32.xlu0 %v461
        %v463 = vpop.xlane.xlu0 %462
        %v464 = vsel %vm428, %v454, 0.0
        %465 = vadd.xlane.f32.xlu0 %v464
        %v466 = vpop.xlane.xlu0 %465
        %v467 = vsel %vm428, %v455, 0.0
        %468 = vadd.xlane.f32.xlu0 %v467
        %v469 = vpop.xlane.xlu0 %468
        %v470 = vsel %vm428, %v456, 0.0
        %471 = vadd.xlane.f32.xlu0 %v470
        %v472 = vpop.xlane.xlu0 %471
        %v473 = vsel %vm428, %v457, 0.0
        %474 = vadd.xlane.f32.xlu0 %v473
        %v475 = vpop.xlane.xlu0 %474
        %v476 = vsel %vm428, %v458, 0.0
        %477 = vadd.xlane.f32.xlu0 %v476
        %v478 = vpop.xlane.xlu0 %477
        %v479 = vsel %vm428, %v459, 0.0
        %480 = vadd.xlane.f32.xlu0 %v479
        %v481 = vpop.xlane.xlu0 %480
        %v482 = vsel %vm428, %v460, 0.0
        %483 = vadd.xlane.f32.xlu0 %v482
        %v484 = vpop.xlane.xlu0 %483
        %v485 = vmul.f32 %v463, 0.16666667
        %v486 = vmul.f32 %v466, 0.16666667
        %v487 = vmul.f32 %v469, 0.16666667
        %v488 = vmul.f32 %v472, 0.16666667
        %v489 = vmul.f32 %v475, 0.16666667
        %v490 = vmul.f32 %v478, 0.16666667
        %v491 = vmul.f32 %v481, 0.16666667
        %v492 = vmul.f32 %v484, 0.16666667
        %v493 = vsub.f32 %v431, %v485
        %v494 = vsub.f32 %v434, %v486
        %v495 = vsub.f32 %v437, %v487
        %v496 = vsub.f32 %v440, %v488
        %v497 = vsub.f32 %v443, %v489
        %v498 = vsub.f32 %v446, %v490
        %v499 = vsub.f32 %v449, %v491
        %v500 = vsub.f32 %v452, %v492
        %v509 = vlaneseq
        %v510 = vand.u32 %v509, 127
        %v511 = vperm.slane %v493, %v510
        %v512 = vadd.s32 %v510, 4294967288
        %v513 = vperm.slane %v494, %v512
        %vm514 = vcmask 130112
        %v515 = vsel %vm514, %v513, %v511
        %v516 = vperm.slane %v495, %v510
        %v517 = vperm.slane %v496, %v512
        %v518 = vsel %vm514, %v517, %v516
        %v519 = vperm.slane %v497, %v510
        %v520 = vperm.slane %v498, %v512
        %v521 = vsel %vm514, %v520, %v519
        %v522 = vperm.slane %v499, %v510
        %v523 = vperm.slane %v500, %v512
        %v524 = vsel %vm514, %v523, %v522
        %vm525 = vcmask 1041409
        %v526 = vsel %vm525, %v518, %v515
        %vm527 = vcmask 1042434
        %v528 = vsel %vm527, %v521, %v526
        %vm529 = vcmask 1043459
        %v530 = vsel %vm529, %v524, %v528
        %vm532 = vcmask 125952
        %533 = vst.msk [vmem:[%s250] sm:$0xf] %vm532, %v530
        %s534 = sand.u32 %s104, 1
        %s535 = scalar_lea.sflag [#allocation4], %s534
        %s536 = sand.u32 %s104, 1
        %s537 = smul.addr %s536, 4
        %s538 = scalar_lea.vmem [#allocation8], %s537
        // Predicated region
        $region45: #{tpu_custom_call.1} parent=31 // pred_check
          %p539 = pneg %p114
        $region46: #{tpu_custom_call.1} parent=31 // pred_check_branch
          %541 = sbr.rel (%p539) target = $region48
        $region47: #{tpu_custom_call.1} parent=31 // pred_region
          %543 = vsyncadd %s535, 0
          %s544 = smul.addr %s23, 4
          %s545 = scalar_lea.hbm %s3, %s544
          %s547 = sshll.u32 %s538, 4
          %s548 = int_to_ptr.vmem [resolvable:$true] %s547
          %s549 = sshll.u32 %s545, 4
          %s550 = int_to_ptr.hbm [resolvable:$true] %s549
          %552 = dma.vmem_to_hbm [thread:$0]  %s548, 64, %s550, %s535
        $region48: #{tpu_custom_call.1} parent=31 // pred_fallthru
          _
      $region32: #{tpu_custom_call.1} parent=5 // pred_fallthru
        _
      %p553 = scmp.le.s32.totalorder 2, %s18
      // Predicated region
      $region49: #{tpu_custom_call.1} parent=5 // pred_check
        %p554 = pneg %p553
      $region50: #{tpu_custom_call.1} parent=5 // pred_check_branch
        %556 = sbr.rel (%p554) target = $region52
      $region51: #{tpu_custom_call.1} parent=5 // pred_region
        %s557 = ssub.s32 %s18, 2
        // Predicated region
        $region53: #{tpu_custom_call.1} parent=51 // pred_check
          %p558 = pneg %p120
        $region54: #{tpu_custom_call.1} parent=51 // pred_check_branch
          %560 = sbr.rel (%p558) target = $region56
        $region55: #{tpu_custom_call.1} parent=51 // pred_region
          %s561 = sand.u32 %s105, 1
          %s562 = scalar_lea.sflag [#allocation4], %s561
          %s563 = sand.u32 %s105, 1
          %s564 = smul.addr %s563, 4
          %s565 = scalar_lea.vmem [#allocation8], %s564
          %567 = dma.done %s562, 64
        $region56: #{tpu_custom_call.1} parent=51 // pred_fallthru
          _
      $region52: #{tpu_custom_call.1} parent=5 // pred_fallthru
        _
    $region6: #{tpu_custom_call.1} parent=1 // loop_footer
      %s22 = sadd.s32 1, %s18
    $region7: #{tpu_custom_call.1} parent=1 // loop_footer_branch
      %17 = sbr.rel target = $region3
    $region8: #{tpu_custom_call.1} parent=1 // loop_exit
      _
    %568 = vsyncpa [#allocation3], 1
    %s569 = scalar_lea.sflag [#allocation3], 1
    %570 = vsyncpa %s569, 1
    %571 = vsyncpa [#allocation6], 1
    %s572 = scalar_lea.sflag [#allocation6], 1
    %573 = vsyncpa %s572, 1
    %574 = vsyncpa [#allocation4], 1
    %s575 = scalar_lea.sflag [#allocation4], 1
    %576 = vsyncpa %s575, 1

</llo_original>
